<compile_context>
chip_gen: v5e
topology: v5e:2x2
jax: 0.10.0
libtpu: 0.0.40
codegen_flags: <defaults>
</compile_context>

<pallas_src>
import functools

import jax
import jax.numpy as jnp
from jax import lax
from jax.experimental import pallas as pl
from jax.experimental.pallas import tpu as pltpu


def _round_up(a: int, b: int) -> int:
    return (a + b - 1) // b * b


def _round_down(a: int, b: int) -> int:
    return a // b * b


def _tpu_budget():
    """Best-effort (VMEM capacity bytes, number of TensorCores) query."""
    vmem_cap = 64 * 1024 * 1024          # conservative default (v7x per-TC VMEM)
    num_cores = 1
    try:
        info = pltpu.get_tpu_info()
        cap = getattr(info, "vmem_capacity_bytes", None)
        if cap:
            vmem_cap = int(cap)
        for name in ("num_cores", "num_tensorcores", "tensorcore_count",
                     "cores_per_chip"):
            v = getattr(info, name, None)
            if v:
                num_cores = int(v)
                break
    except Exception:
        pass
    return vmem_cap, num_cores


def _ruzicka_kernel(x_ref, y_ref, sum_y_ref, o_ref, num_acc, *, m_true, pad_rows):
    """One (tn, td) tile of x against one (tm, td) block of y.

    Grid axes: (x row-tile [parallel], D lane-tile [parallel], y row-block
    [arbitrary, innermost]).  num_acc is a (tn, td) f32 accumulator scratch.
    """
    jm = pl.program_id(2)
    n_jm = pl.num_programs(2)

    x = x_ref[...].astype(jnp.float32)                    # (tn, td)
    tm = y_ref.shape[0]                                   # static, multiple of 8

    # Step the y rows 8 at a time: one aligned (8, td) vector load per step,
    # then 8 mins against in-register sublane splats of that tile.
    def body8(k, num):
        r = pl.multiple_of(k * 8, 8)
        yt = y_ref[pl.ds(r, 8), :].astype(jnp.float32)    # aligned (8, td) vld
        for s in range(8):                                # static -> cheap splats
            num = num + jnp.minimum(x, yt[s:s + 1, :])
        return num

    num_blk = lax.fori_loop(0, tm // 8, body8, jnp.zeros_like(x), unroll=False)

    @pl.when(jm == 0)
    def _():
        num_acc[...] = jnp.zeros_like(num_acc)

    num_acc[...] += num_blk

    @pl.when(jm == n_jm - 1)
    def _():
        num = num_acc[...]
        if pad_rows:
            # y was zero-padded by `pad_rows` rows; each padded row added
            # min(x, 0) to num.  Subtract it back (exact for any-sign inputs).
            num = num - jnp.float32(pad_rows) * jnp.minimum(x, jnp.float32(0.0))
        # min(a,b) + max(a,b) = a + b  =>  sum_m max(x, y_m) = M*x + sum_y - num
        den = (jnp.float32(m_true) * x
               + sum_y_ref[...].astype(jnp.float32)
               - num + jnp.float32(1e-8))
        inv = pl.reciprocal(den, approx=True)             # EUP slot
        inv = inv * (jnp.float32(2.0) - den * inv)        # one Newton step
        o_ref[...] = (num * inv).astype(o_ref.dtype)


def ruzicka(x, y):
    """x: (N, D), y: (M, D) -> (N, 1, D), matching the PyTorch module."""
    N, D = x.shape
    M, Dy = y.shape
    assert D == Dy, "feature dims must match"

    itemsize = jnp.dtype(y.dtype).itemsize
    vmem_cap, num_cores = _tpu_budget()
    # Generation-aware scoped-VMEM request (~51 MiB on v7x, ~100 MiB on v5e/v6e).
    vmem_limit = min(int(vmem_cap * 0.80), 100 * 1024 * 1024)

    # --- D: pad to a lane-dense multiple of 128, tile if large ---------------
    Dp = _round_up(D, 128)
    if Dp <= 512:
        td = Dp
    elif Dp % 512 == 0:
        td = 512
    elif Dp % 256 == 0:
        td = 256
    else:
        td = 128
    jd_steps = Dp // td

    # --- row tile of x: keep the register carry (x + num) from spilling ------
    tn = min(128, max(8, _round_down(16384 // td, 8)))
    tn = max(8, min(tn, _round_up(N, 8)))
    np_rows = _round_up(N, tn)
    # Only split rows for megacore if the chip actually has >1 TensorCore.
    if num_cores >= 2 and (np_rows // tn) % num_cores != 0 and tn >= 16:
        tn = max(8, _round_up(tn // 2, 8))
        np_rows = _round_up(N, tn)
    i_steps = np_rows // tn

    # --- y row blocking: resident + single-buffered if it fits, else stream --
    fixed = (2 * 2 * tn * td * itemsize     # double-buffered x-in and out tiles
             + tn * td * 4                  # num accumulator scratch
             + 2 * td * 4                   # sum_y
             + (2 << 20))                   # compiler internal scratch headroom
    budget = max(vmem_limit - fixed, 1 << 20)

    m8 = _round_up(M, 8)
    if jd_steps == 1 and m8 * td * itemsize <= budget:
        tm, y_single_buffer = m8, True                 # fully resident, 1 buffer
    elif 2 * m8 * td * itemsize <= budget:
        tm, y_single_buffer = m8, False                # resident per D-tile
    else:
        tm = min(m8, max(8, min(2048, _round_down(budget // (2 * td * itemsize), 8))))
        y_single_buffer = False                        # streamed y blocks
    mp = _round_up(M, tm)
    jm_steps = mp // tm
    pad_rows = mp - M

    # --- wrapper-side padding (zeros) and the tiny sum_y reduction -----------
    x_p = jnp.pad(x, ((0, np_rows - N), (0, Dp - D)))
    y_p = jnp.pad(y, ((0, mp - M), (0, Dp - D)))
    sum_y = jnp.sum(y_p.astype(jnp.float32), axis=0, keepdims=True)   # (1, Dp)

    kernel = functools.partial(_ruzicka_kernel, m_true=M, pad_rows=pad_rows)

    def build(use_hints):
        def spec(shape, imap, single):
            if use_hints and single:
                return pl.BlockSpec(shape, imap, pipeline_mode=pl.Buffered(1))
            return pl.BlockSpec(shape, imap)

        return pl.pallas_call(
            kernel,
            out_shape=jax.ShapeDtypeStruct((np_rows, Dp), x.dtype),
            grid_spec=pltpu.PrefetchScalarGridSpec(
                num_scalar_prefetch=0,
                grid=(i_steps, jd_steps, jm_steps),
                in_specs=[
                    pl.BlockSpec((tn, td), lambda i, jd, jm: (i, jd)),        # x
                    spec((tm, td), lambda i, jd, jm: (jm, jd),                # y
                         y_single_buffer),
                    spec((1, td), lambda i, jd, jm: (0, jd),                  # sum_y
                         jd_steps == 1),
                ],
                out_specs=pl.BlockSpec((tn, td), lambda i, jd, jm: (i, jd)),
                scratch_shapes=[pltpu.VMEM((tn, td), jnp.float32)],
            ),
            compiler_params=pltpu.CompilerParams(
                dimension_semantics=("parallel", "parallel", "arbitrary"),
                vmem_limit_bytes=vmem_limit,
            ),
        )

    try:
        out = build(True)(x_p, y_p, sum_y)
    except Exception:
        # TODO(synk): drop this fallback once pl.Buffered(1) is guaranteed on
        # all deployed jax versions; it only disables the single-buffer hint.
        out = build(False)(x_p, y_p, sum_y)

    # Glue: match PyTorch output shape (N, 1, D).
    return out[:N, :D].reshape(N, 1, D)


def ruzicka_ref(x, y):
    # Pure-JAX reference of the exact PyTorch semantics.
    xb = x[:, None, None, :]                 # (N,1,1,D)
    yb = y[None, None, :, :]                 # (1,1,M,D)
    num = jnp.minimum(xb, yb).sum(axis=2)    # (N,1,D)
    den = jnp.maximum(xb, yb).sum(axis=2) + 1e-8
    return num / den


if __name__ == "__main__":
    key = jax.random.PRNGKey(0)
    kx, ky = jax.random.split(key)
    N, M, D = 8, 16, 128
    # Non-negative inputs (typical for Ruzicka similarity), float32.
    x = jax.random.uniform(kx, (N, D), dtype=jnp.float32)
    y = jax.random.uniform(ky, (M, D), dtype=jnp.float32)

    out = jax.block_until_ready(ruzicka(x, y))
    ref = ruzicka_ref(x, y)

    assert out.shape == (N, 1, D)
    assert jnp.allclose(out, ref, atol=1e-5, rtol=1e-5)

    print("KERNEL_OK")
</pallas_src>

<mosaic_0001>
module attributes {stable_mosaic.version = 11 : i64} {
  func.func @_ruzicka_kernel(%arg0: i32, %arg1: i32, %arg2: i32, %arg3: memref<8x128xf32, #tpu.memory_space<vmem>>, %arg4: memref<16x128xf32, #tpu.memory_space<vmem>>, %arg5: memref<1x128xf32, #tpu.memory_space<vmem>>, %arg6: memref<8x128xf32, #tpu.memory_space<vmem>>, %arg7: memref<8x128xf32, #tpu.memory_space<vmem>>) attributes {dimension_semantics = [#tpu.dimension_semantics<parallel>, #tpu.dimension_semantics<parallel>, #tpu.dimension_semantics<arbitrary>], iteration_bounds = array<i64: 1, 1, 1>, scalar_prefetch = 0 : i64, scratch_operands = 1 : i64, tpu.core_type = #tpu.core_type<tc>, window_params = [{transform_indices = @transform_0, window_bounds = array<i64: 8, 128>}, {pipeline_mode = #tpu.pipeline_mode<synchronous>, transform_indices = @transform_1, window_bounds = array<i64: 16, 128>}, {pipeline_mode = #tpu.pipeline_mode<synchronous>, transform_indices = @transform_2, window_bounds = array<i64: 1, 128>}, {transform_indices = @transform_3, window_bounds = array<i64: 8, 128>}]} {
    %c0 = arith.constant 0 : index
    %c0_0 = arith.constant 0 : index
    %0 = vector.load %arg3[%c0, %c0_0] : memref<8x128xf32, #tpu.memory_space<vmem>>, vector<8x128xf32>
    %cst = arith.constant 0.000000e+00 : f32
    %1 = vector.broadcast %cst : f32 to vector<8x128xf32>
    %c0_i32 = arith.constant 0 : i32
    %c2_i32 = arith.constant 2 : i32
    %2 = arith.addi %c0_i32, %c2_i32 : i32
    %c1_i32 = arith.constant 1 : i32
    %3 = scf.for %arg8 = %c0_i32 to %2 step %c1_i32 iter_args(%arg9 = %1) -> (vector<8x128xf32>)  : i32 {
      %c8_i32 = arith.constant 8 : i32
      %13 = arith.muli %arg8, %c8_i32 : i32
      %14 = tpu.assume_multiple %13, 8 : i32
      %15 = arith.index_cast %14 : i32 to index
      %c0_10 = arith.constant 0 : index
      %16 = vector.load %arg4[%15, %c0_10] : memref<16x128xf32, #tpu.memory_space<vmem>>, vector<8x128xf32>
      %17 = vector.extract_strided_slice %16 {offsets = [0, 0], sizes = [1, 128], strides = [1, 1]} : vector<8x128xf32> to vector<1x128xf32>
      %18 = vector.broadcast %17 : vector<1x128xf32> to vector<8x128xf32>
      %19 = arith.minimumf %0, %18 : vector<8x128xf32>
      %20 = arith.addf %arg9, %19 : vector<8x128xf32>
      %21 = vector.extract_strided_slice %16 {offsets = [1, 0], sizes = [1, 128], strides = [1, 1]} : vector<8x128xf32> to vector<1x128xf32>
      %22 = vector.broadcast %21 : vector<1x128xf32> to vector<8x128xf32>
      %23 = arith.minimumf %0, %22 : vector<8x128xf32>
      %24 = arith.addf %20, %23 : vector<8x128xf32>
      %25 = vector.extract_strided_slice %16 {offsets = [2, 0], sizes = [1, 128], strides = [1, 1]} : vector<8x128xf32> to vector<1x128xf32>
      %26 = vector.broadcast %25 : vector<1x128xf32> to vector<8x128xf32>
      %27 = arith.minimumf %0, %26 : vector<8x128xf32>
      %28 = arith.addf %24, %27 : vector<8x128xf32>
      %29 = vector.extract_strided_slice %16 {offsets = [3, 0], sizes = [1, 128], strides = [1, 1]} : vector<8x128xf32> to vector<1x128xf32>
      %30 = vector.broadcast %29 : vector<1x128xf32> to vector<8x128xf32>
      %31 = arith.minimumf %0, %30 : vector<8x128xf32>
      %32 = arith.addf %28, %31 : vector<8x128xf32>
      %33 = vector.extract_strided_slice %16 {offsets = [4, 0], sizes = [1, 128], strides = [1, 1]} : vector<8x128xf32> to vector<1x128xf32>
      %34 = vector.broadcast %33 : vector<1x128xf32> to vector<8x128xf32>
      %35 = arith.minimumf %0, %34 : vector<8x128xf32>
      %36 = arith.addf %32, %35 : vector<8x128xf32>
      %37 = vector.extract_strided_slice %16 {offsets = [5, 0], sizes = [1, 128], strides = [1, 1]} : vector<8x128xf32> to vector<1x128xf32>
      %38 = vector.broadcast %37 : vector<1x128xf32> to vector<8x128xf32>
      %39 = arith.minimumf %0, %38 : vector<8x128xf32>
      %40 = arith.addf %36, %39 : vector<8x128xf32>
      %41 = vector.extract_strided_slice %16 {offsets = [6, 0], sizes = [1, 128], strides = [1, 1]} : vector<8x128xf32> to vector<1x128xf32>
      %42 = vector.broadcast %41 : vector<1x128xf32> to vector<8x128xf32>
      %43 = arith.minimumf %0, %42 : vector<8x128xf32>
      %44 = arith.addf %40, %43 : vector<8x128xf32>
      %45 = vector.extract_strided_slice %16 {offsets = [7, 0], sizes = [1, 128], strides = [1, 1]} : vector<8x128xf32> to vector<1x128xf32>
      %46 = vector.broadcast %45 : vector<1x128xf32> to vector<8x128xf32>
      %47 = arith.minimumf %0, %46 : vector<8x128xf32>
      %48 = arith.addf %44, %47 : vector<8x128xf32>
      scf.yield %48 : vector<8x128xf32>
    }
    %c2_i32_1 = arith.constant 2 : i32
    %c0_i32_2 = arith.constant 0 : i32
    %4 = arith.cmpi eq, %arg2, %c0_i32_2 : i32
    %5 = arith.extui %4 : i1 to i32
    %c0_i32_3 = arith.constant 0 : i32
    %6 = arith.cmpi ne, %5, %c0_i32_3 : i32
    scf.if %6 {
      %cst_10 = arith.constant 0.000000e+00 : f32
      %13 = vector.broadcast %cst_10 : f32 to vector<8x128xf32>
      %c0_11 = arith.constant 0 : index
      %c0_12 = arith.constant 0 : index
      %14 = vector.load %arg7[%c0_11, %c0_12] : memref<8x128xf32, #tpu.memory_space<vmem>>, vector<8x128xf32>
      tpu.vector_store %arg7[%c0_11, %c0_12], %13 {strides = array<i32>} : memref<8x128xf32, #tpu.memory_space<vmem>>, vector<8x128xf32>,
    } else {
    }
    %c0_4 = arith.constant 0 : index
    %c0_5 = arith.constant 0 : index
    %7 = vector.load %arg7[%c0_4, %c0_5] : memref<8x128xf32, #tpu.memory_space<vmem>>, vector<8x128xf32>
    %8 = arith.addf %7, %3 : vector<8x128xf32>
    %c0_6 = arith.constant 0 : index
    %c0_7 = arith.constant 0 : index
    %9 = vector.load %arg7[%c0_6, %c0_7] : memref<8x128xf32, #tpu.memory_space<vmem>>, vector<8x128xf32>
    tpu.vector_store %arg7[%c0_6, %c0_7], %8 {strides = array<i32>} : memref<8x128xf32, #tpu.memory_space<vmem>>, vector<8x128xf32>,
    %c0_i32_8 = arith.constant 0 : i32
    %10 = arith.cmpi eq, %arg2, %c0_i32_8 : i32
    %11 = arith.extui %10 : i1 to i32
    %c0_i32_9 = arith.constant 0 : i32
    %12 = arith.cmpi ne, %11, %c0_i32_9 : i32
    scf.if %12 {
      %c0_10 = arith.constant 0 : index
      %c0_11 = arith.constant 0 : index
      %13 = vector.load %arg7[%c0_10, %c0_11] : memref<8x128xf32, #tpu.memory_space<vmem>>, vector<8x128xf32>
      %cst_12 = arith.constant 1.600000e+01 : f32
      %14 = vector.broadcast %cst_12 : f32 to vector<8x128xf32>
      %15 = arith.mulf %14, %0 : vector<8x128xf32>
      %c0_13 = arith.constant 0 : index
      %c0_14 = arith.constant 0 : index
      %16 = vector.load %arg5[%c0_13, %c0_14] : memref<1x128xf32, #tpu.memory_space<vmem>>, vector<1x128xf32>
      %17 = vector.broadcast %16 : vector<1x128xf32> to vector<8x128xf32>
      %18 = arith.addf %15, %17 : vector<8x128xf32>
      %19 = arith.subf %18, %13 : vector<8x128xf32>
      %cst_15 = arith.constant 9.99999993E-9 : f32
      %20 = vector.broadcast %cst_15 : f32 to vector<8x128xf32>
      %21 = arith.addf %19, %20 : vector<8x128xf32>
      %22 = tpu.reciprocal %21 {approx = true} : vector<8x128xf32> -> vector<8x128xf32>
      %23 = arith.mulf %21, %22 : vector<8x128xf32>
      %cst_16 = arith.constant 2.000000e+00 : f32
      %24 = vector.broadcast %cst_16 : f32 to vector<8x128xf32>
      %25 = arith.subf %24, %23 : vector<8x128xf32>
      %26 = arith.mulf %22, %25 : vector<8x128xf32>
      %27 = arith.mulf %13, %26 : vector<8x128xf32>
      %c0_17 = arith.constant 0 : index
      %c0_18 = arith.constant 0 : index
      %28 = vector.load %arg6[%c0_17, %c0_18] : memref<8x128xf32, #tpu.memory_space<vmem>>, vector<8x128xf32>
      tpu.vector_store %arg6[%c0_17, %c0_18], %27 {strides = array<i32>} : memref<8x128xf32, #tpu.memory_space<vmem>>, vector<8x128xf32>,
    } else {
    }
    return
  }
  func.func @transform_0(%arg0: i32, %arg1: i32, %arg2: i32) -> (i32, i32) {
    %c0_i32 = arith.constant 0 : i32
    return %arg0, %arg1 : i32, i32
  }
  func.func @transform_1(%arg0: i32, %arg1: i32, %arg2: i32) -> (i32, i32) {
    %c0_i32 = arith.constant 0 : i32
    return %arg2, %arg1 : i32, i32
  }
  func.func @transform_2(%arg0: i32, %arg1: i32, %arg2: i32) -> (i32, i32) {
    %c0_i32 = arith.constant 0 : i32
    %c0_i32_0 = arith.constant 0 : i32
    return %c0_i32, %arg1 : i32, i32
  }
  func.func @transform_3(%arg0: i32, %arg1: i32, %arg2: i32) -> (i32, i32) {
    %c0_i32 = arith.constant 0 : i32
    return %arg0, %arg1 : i32, i32
  }
}

module attributes {stable_mosaic.version = 11 : i64} {
  func.func @_ruzicka_kernel(%arg0: i32, %arg1: i32, %arg2: i32, %arg3: memref<8x128xf32, #tpu.memory_space<vmem>>, %arg4: memref<16x128xf32, #tpu.memory_space<vmem>>, %arg5: memref<1x128xf32, #tpu.memory_space<vmem>>, %arg6: memref<8x128xf32, #tpu.memory_space<vmem>>, %arg7: memref<8x128xf32, #tpu.memory_space<vmem>>) attributes {dimension_semantics = [#tpu.dimension_semantics<parallel>, #tpu.dimension_semantics<parallel>, #tpu.dimension_semantics<arbitrary>], iteration_bounds = array<i64: 1, 1, 1>, scalar_prefetch = 0 : i64, scratch_operands = 1 : i64, tpu.core_type = #tpu.core_type<tc>, window_params = [{transform_indices = @transform_0, window_bounds = array<i64: 8, 128>}, {transform_indices = @transform_1, window_bounds = array<i64: 16, 128>}, {transform_indices = @transform_2, window_bounds = array<i64: 1, 128>}, {transform_indices = @transform_3, window_bounds = array<i64: 8, 128>}]} {
    %c0 = arith.constant 0 : index
    %c0_0 = arith.constant 0 : index
    %0 = vector.load %arg3[%c0, %c0_0] : memref<8x128xf32, #tpu.memory_space<vmem>>, vector<8x128xf32>
    %cst = arith.constant 0.000000e+00 : f32
    %1 = vector.broadcast %cst : f32 to vector<8x128xf32>
    %c0_i32 = arith.constant 0 : i32
    %c2_i32 = arith.constant 2 : i32
    %2 = arith.addi %c0_i32, %c2_i32 : i32
    %c1_i32 = arith.constant 1 : i32
    %3 = scf.for %arg8 = %c0_i32 to %2 step %c1_i32 iter_args(%arg9 = %1) -> (vector<8x128xf32>)  : i32 {
      %c8_i32 = arith.constant 8 : i32
      %13 = arith.muli %arg8, %c8_i32 : i32
      %14 = tpu.assume_multiple %13, 8 : i32
      %15 = arith.index_cast %14 : i32 to index
      %c0_10 = arith.constant 0 : index
      %16 = vector.load %arg4[%15, %c0_10] : memref<16x128xf32, #tpu.memory_space<vmem>>, vector<8x128xf32>
      %17 = vector.extract_strided_slice %16 {offsets = [0, 0], sizes = [1, 128], strides = [1, 1]} : vector<8x128xf32> to vector<1x128xf32>
      %18 = vector.broadcast %17 : vector<1x128xf32> to vector<8x128xf32>
      %19 = arith.minimumf %0, %18 : vector<8x128xf32>
      %20 = arith.addf %arg9, %19 : vector<8x128xf32>
      %21 = vector.extract_strided_slice %16 {offsets = [1, 0], sizes = [1, 128], strides = [1, 1]} : vector<8x128xf32> to vector<1x128xf32>
      %22 = vector.broadcast %21 : vector<1x128xf32> to vector<8x128xf32>
      %23 = arith.minimumf %0, %22 : vector<8x128xf32>
      %24 = arith.addf %20, %23 : vector<8x128xf32>
      %25 = vector.extract_strided_slice %16 {offsets = [2, 0], sizes = [1, 128], strides = [1, 1]} : vector<8x128xf32> to vector<1x128xf32>
      %26 = vector.broadcast %25 : vector<1x128xf32> to vector<8x128xf32>
      %27 = arith.minimumf %0, %26 : vector<8x128xf32>
      %28 = arith.addf %24, %27 : vector<8x128xf32>
      %29 = vector.extract_strided_slice %16 {offsets = [3, 0], sizes = [1, 128], strides = [1, 1]} : vector<8x128xf32> to vector<1x128xf32>
      %30 = vector.broadcast %29 : vector<1x128xf32> to vector<8x128xf32>
      %31 = arith.minimumf %0, %30 : vector<8x128xf32>
      %32 = arith.addf %28, %31 : vector<8x128xf32>
      %33 = vector.extract_strided_slice %16 {offsets = [4, 0], sizes = [1, 128], strides = [1, 1]} : vector<8x128xf32> to vector<1x128xf32>
      %34 = vector.broadcast %33 : vector<1x128xf32> to vector<8x128xf32>
      %35 = arith.minimumf %0, %34 : vector<8x128xf32>
      %36 = arith.addf %32, %35 : vector<8x128xf32>
      %37 = vector.extract_strided_slice %16 {offsets = [5, 0], sizes = [1, 128], strides = [1, 1]} : vector<8x128xf32> to vector<1x128xf32>
      %38 = vector.broadcast %37 : vector<1x128xf32> to vector<8x128xf32>
      %39 = arith.minimumf %0, %38 : vector<8x128xf32>
      %40 = arith.addf %36, %39 : vector<8x128xf32>
      %41 = vector.extract_strided_slice %16 {offsets = [6, 0], sizes = [1, 128], strides = [1, 1]} : vector<8x128xf32> to vector<1x128xf32>
      %42 = vector.broadcast %41 : vector<1x128xf32> to vector<8x128xf32>
      %43 = arith.minimumf %0, %42 : vector<8x128xf32>
      %44 = arith.addf %40, %43 : vector<8x128xf32>
      %45 = vector.extract_strided_slice %16 {offsets = [7, 0], sizes = [1, 128], strides = [1, 1]} : vector<8x128xf32> to vector<1x128xf32>
      %46 = vector.broadcast %45 : vector<1x128xf32> to vector<8x128xf32>
      %47 = arith.minimumf %0, %46 : vector<8x128xf32>
      %48 = arith.addf %44, %47 : vector<8x128xf32>
      scf.yield %48 : vector<8x128xf32>
    }
    %c2_i32_1 = arith.constant 2 : i32
    %c0_i32_2 = arith.constant 0 : i32
    %4 = arith.cmpi eq, %arg2, %c0_i32_2 : i32
    %5 = arith.extui %4 : i1 to i32
    %c0_i32_3 = arith.constant 0 : i32
    %6 = arith.cmpi ne, %5, %c0_i32_3 : i32
    scf.if %6 {
      %cst_10 = arith.constant 0.000000e+00 : f32
      %13 = vector.broadcast %cst_10 : f32 to vector<8x128xf32>
      %c0_11 = arith.constant 0 : index
      %c0_12 = arith.constant 0 : index
      %14 = vector.load %arg7[%c0_11, %c0_12] : memref<8x128xf32, #tpu.memory_space<vmem>>, vector<8x128xf32>
      tpu.vector_store %arg7[%c0_11, %c0_12], %13 {strides = array<i32>} : memref<8x128xf32, #tpu.memory_space<vmem>>, vector<8x128xf32>,
    } else {
    }
    %c0_4 = arith.constant 0 : index
    %c0_5 = arith.constant 0 : index
    %7 = vector.load %arg7[%c0_4, %c0_5] : memref<8x128xf32, #tpu.memory_space<vmem>>, vector<8x128xf32>
    %8 = arith.addf %7, %3 : vector<8x128xf32>
    %c0_6 = arith.constant 0 : index
    %c0_7 = arith.constant 0 : index
    %9 = vector.load %arg7[%c0_6, %c0_7] : memref<8x128xf32, #tpu.memory_space<vmem>>, vector<8x128xf32>
    tpu.vector_store %arg7[%c0_6, %c0_7], %8 {strides = array<i32>} : memref<8x128xf32, #tpu.memory_space<vmem>>, vector<8x128xf32>,
    %c0_i32_8 = arith.constant 0 : i32
    %10 = arith.cmpi eq, %arg2, %c0_i32_8 : i32
    %11 = arith.extui %10 : i1 to i32
    %c0_i32_9 = arith.constant 0 : i32
    %12 = arith.cmpi ne, %11, %c0_i32_9 : i32
    scf.if %12 {
      %c0_10 = arith.constant 0 : index
      %c0_11 = arith.constant 0 : index
      %13 = vector.load %arg7[%c0_10, %c0_11] : memref<8x128xf32, #tpu.memory_space<vmem>>, vector<8x128xf32>
      %cst_12 = arith.constant 1.600000e+01 : f32
      %14 = vector.broadcast %cst_12 : f32 to vector<8x128xf32>
      %15 = arith.mulf %14, %0 : vector<8x128xf32>
      %c0_13 = arith.constant 0 : index
      %c0_14 = arith.constant 0 : index
      %16 = vector.load %arg5[%c0_13, %c0_14] : memref<1x128xf32, #tpu.memory_space<vmem>>, vector<1x128xf32>
      %17 = vector.broadcast %16 : vector<1x128xf32> to vector<8x128xf32>
      %18 = arith.addf %15, %17 : vector<8x128xf32>
      %19 = arith.subf %18, %13 : vector<8x128xf32>
      %cst_15 = arith.constant 9.99999993E-9 : f32
      %20 = vector.broadcast %cst_15 : f32 to vector<8x128xf32>
      %21 = arith.addf %19, %20 : vector<8x128xf32>
      %22 = tpu.reciprocal %21 {approx = true} : vector<8x128xf32> -> vector<8x128xf32>
      %23 = arith.mulf %21, %22 : vector<8x128xf32>
      %cst_16 = arith.constant 2.000000e+00 : f32
      %24 = vector.broadcast %cst_16 : f32 to vector<8x128xf32>
      %25 = arith.subf %24, %23 : vector<8x128xf32>
      %26 = arith.mulf %22, %25 : vector<8x128xf32>
      %27 = arith.mulf %13, %26 : vector<8x128xf32>
      %c0_17 = arith.constant 0 : index
      %c0_18 = arith.constant 0 : index
      %28 = vector.load %arg6[%c0_17, %c0_18] : memref<8x128xf32, #tpu.memory_space<vmem>>, vector<8x128xf32>
      tpu.vector_store %arg6[%c0_17, %c0_18], %27 {strides = array<i32>} : memref<8x128xf32, #tpu.memory_space<vmem>>, vector<8x128xf32>,
    } else {
    }
    return
  }
  func.func @transform_0(%arg0: i32, %arg1: i32, %arg2: i32) -> (i32, i32) {
    %c0_i32 = arith.constant 0 : i32
    return %arg0, %arg1 : i32, i32
  }
  func.func @transform_1(%arg0: i32, %arg1: i32, %arg2: i32) -> (i32, i32) {
    %c0_i32 = arith.constant 0 : i32
    return %arg2, %arg1 : i32, i32
  }
  func.func @transform_2(%arg0: i32, %arg1: i32, %arg2: i32) -> (i32, i32) {
    %c0_i32 = arith.constant 0 : i32
    %c0_i32_0 = arith.constant 0 : i32
    return %c0_i32, %arg1 : i32, i32
  }
  func.func @transform_3(%arg0: i32, %arg1: i32, %arg2: i32) -> (i32, i32) {
    %c0_i32 = arith.constant 0 : i32
    return %arg0, %arg1 : i32, i32
  }
}

</mosaic_0001>

<llo_original>
// kernel: tpu_custom_call.1
$region0: #{tpu_custom_call.1}
  #allocation0 [shape = 'u32[]', space=smem, size = 0x4, offset = 0x4, fixed_abs, tag = 'smem constant byte address 0x4 - core index']
  #allocation1 [shape = 'u32[72,128]{1,0:T(1,128)}', space=vmem, size = 0x9000, scoped, tag = 'internal scratch']
  #allocation2 [shape = 'f32[8,128]{1,0:T(8,128)}', space=vmem, size = 0x1000, scoped, tag = 'scratch operand']
  %s0 = inlined_call_operand.hbm [shape: f32[8,128], index: 0, kind: input, shape index: {}]
  %s1 = inlined_call_operand.hbm [shape: f32[16,128], index: 1, kind: input, shape index: {}]
  %s2 = inlined_call_operand.vmem [shape: f32[1,128], index: 2, kind: input, shape index: {}]
  %s3 = inlined_call_operand.hbm [shape: f32[8,128], index: 3, kind: output, shape index: {}]
  %s4 = sld [smem:[#allocation0]]
  $region45: #{tpu_custom_call.1} parent=0
    _
  %s6 = ssub.s32 1, %s4
  %s7 = scalar_select 0, %s6, %s4
  $region1: #{tpu_custom_call.1} parent=0
    #allocation3 [shape = 'u8[4096]{0}', space=vmem, size = 0x1000, scoped, tag = 'input window, operand 0, single buffered']
    #allocation4 [shape = 's32[1]{0}', space=sflag, size = 0x4, scoped, tag = 'scoped memory for tpu_custom_call.1']
    #allocation5 [shape = 's32[1]{0}', space=sflag, size = 0x4, scoped, tag = 'scoped memory for tpu_custom_call.1']
    #allocation6 [shape = 'u8[8192]{0}', space=vmem, size = 0x2000, scoped, tag = 'input window, operand 1, single buffered']
    #allocation7 [shape = 's32[1]{0}', space=sflag, size = 0x4, scoped, tag = 'scoped memory for tpu_custom_call.1']
    #allocation8 [shape = 'u8[4096]{0}', space=vmem, size = 0x1000, scoped, tag = 'output window, operand 0, single buffered']
    %8 = vsyncpa [#allocation4], 0
    %9 = vsyncpa [#allocation7], 0
    %10 = vsyncpa [#allocation5], 0
    // Predicated region
    $region2: #{tpu_custom_call.1} parent=1 // pred_check
      _
    $region3: #{tpu_custom_call.1} parent=1 // pred_check_branch
      %12 = sbr.rel (0) target = $region5
    $region4: #{tpu_custom_call.1} parent=1 // pred_region
      %14 = vsyncadd [#allocation4], 0
      %s16 = sshll.u32 %s0, 4
      %s17 = int_to_ptr.hbm [resolvable:$true] %s16
      %s18 = sshll.u32 [#allocation3], 4
      %s19 = int_to_ptr.vmem [resolvable:$true] %s18
      %21 = dma.hbm_to_vmem [thread:$0]  %s17, 128, %s19, [#allocation4]
    $region5: #{tpu_custom_call.1} parent=1 // pred_fallthru
      _
    // Predicated region
    $region6: #{tpu_custom_call.1} parent=1 // pred_check
      _
    $region7: #{tpu_custom_call.1} parent=1 // pred_check_branch
      %23 = sbr.rel (0) target = $region9
    $region8: #{tpu_custom_call.1} parent=1 // pred_region
      %25 = vsyncadd [#allocation7], 0
      %s26 = sshll.u32 %s1, 4
      %s27 = int_to_ptr.hbm [resolvable:$true] %s26
      %s28 = sshll.u32 [#allocation6], 4
      %s29 = int_to_ptr.vmem [resolvable:$true] %s28
      %34 = dma.hbm_to_vmem [thread:$0]  %s27, 256, %s29, [#allocation7], 128, 128, 8
    $region9: #{tpu_custom_call.1} parent=1 // pred_fallthru
      _
    // Predicated region
    $region10: #{tpu_custom_call.1} parent=1 // pred_check
      _
    $region11: #{tpu_custom_call.1} parent=1 // pred_check_branch
      %36 = sbr.rel (0) target = $region13
    $region12: #{tpu_custom_call.1} parent=1 // pred_region
      _
    $region13: #{tpu_custom_call.1} parent=1 // pred_fallthru
      _
    // Predicated region
    $region14: #{tpu_custom_call.1} parent=1 // pred_check
      _
    $region15: #{tpu_custom_call.1} parent=1 // pred_check_branch
      %38 = sbr.rel (0) target = $region17
    $region16: #{tpu_custom_call.1} parent=1 // pred_region
      %40 = dma.done [#allocation4], 128
    $region17: #{tpu_custom_call.1} parent=1 // pred_fallthru
      _
    // Predicated region
    $region18: #{tpu_custom_call.1} parent=1 // pred_check
      _
    $region19: #{tpu_custom_call.1} parent=1 // pred_check_branch
      %42 = sbr.rel (0) target = $region21
    $region20: #{tpu_custom_call.1} parent=1 // pred_region
      %44 = dma.done [#allocation7], 256
    $region21: #{tpu_custom_call.1} parent=1 // pred_fallthru
      _
    %v45 = vld [vmem:[#allocation3] sm:$0xff]
    loop: start=0, step=1, limit=2
    $region22: #{tpu_custom_call.1} parent=1 // loop_pre_header
      _
    $region23: #{tpu_custom_call.1} parent=1 // loop_header
      %s47 = sphi 0, %s51
      %p48 = scmp.ge.s32.totalorder %s47, 2
      %v52 = vphi 0.0, %v79
    $region24: #{tpu_custom_call.1} parent=1 // loop_header_branch
      %50 = sbr.rel (%p48) target = $region28
    $region25: #{tpu_custom_call.1} parent=1 // loop_body
      %s53 = smul.u32 %s47, 8
      %s54 = scalar_lea.vmem [#allocation6], %s53
      %v55 = vld [vmem:[%s54] sm:$0xff]
      %v56 = vperm.slane %v55, 0
      %v57 = vmin.f32 %v45, %v56
      %v58 = vadd.f32 %v52, %v57
      %v59 = vperm.slane %v55, 1
      %v60 = vmin.f32 %v45, %v59
      %v61 = vadd.f32 %v58, %v60
      %v62 = vperm.slane %v55, 2
      %v63 = vmin.f32 %v45, %v62
      %v64 = vadd.f32 %v61, %v63
      %v65 = vperm.slane %v55, 3
      %v66 = vmin.f32 %v45, %v65
      %v67 = vadd.f32 %v64, %v66
      %v68 = vperm.slane %v55, 4
      %v69 = vmin.f32 %v45, %v68
      %v70 = vadd.f32 %v67, %v69
      %v71 = vperm.slane %v55, 5
      %v72 = vmin.f32 %v45, %v71
      %v73 = vadd.f32 %v70, %v72
      %v74 = vperm.slane %v55, 6
      %v75 = vmin.f32 %v45, %v74
      %v76 = vadd.f32 %v73, %v75
      %v77 = vperm.slane %v55, 7
      %v78 = vmin.f32 %v45, %v77
      %v79 = vadd.f32 %v76, %v78
    $region26: #{tpu_custom_call.1} parent=1 // loop_footer
      %s51 = sadd.s32 1, %s47
    $region27: #{tpu_custom_call.1} parent=1 // loop_footer_branch
      %46 = sbr.rel target = $region23
    $region28: #{tpu_custom_call.1} parent=1 // loop_exit
      _
    %p80 = scmp.eq.s32.totalorder 0, 0
    // Predicated region
    $region29: #{tpu_custom_call.1} parent=1 // pred_check
      %p81 = pneg %p80
    $region30: #{tpu_custom_call.1} parent=1 // pred_check_branch
      %83 = sbr.rel (%p81) target = $region32
    $region31: #{tpu_custom_call.1} parent=1 // pred_region
      %84 = vst [vmem:[#allocation2] sm:$0xff] 0.0
    $region32: #{tpu_custom_call.1} parent=1 // pred_fallthru
      _
    %v85 = vld [vmem:[#allocation2] sm:$0xff]
    %v86 = vadd.f32 %v85, %v52
    %87 = vst [vmem:[#allocation2] sm:$0xff] %v86
    // Predicated region
    $region33: #{tpu_custom_call.1} parent=1 // pred_check
      %p88 = pneg %p80
    $region34: #{tpu_custom_call.1} parent=1 // pred_check_branch
      %90 = sbr.rel (%p88) target = $region36
    $region35: #{tpu_custom_call.1} parent=1 // pred_region
      %v91 = vld [vmem:[#allocation2] sm:$0xff]
      %v92 = vmul.f32 %v45, 16.0
      %v93 = vld [vmem:[%s2] sm:$0x1]
      %v95 = vperm.slane %v93, 0
      %v97 = vadd.f32 %v92, %v95
      %v98 = vsub.f32 %v97, %v91
      %v99 = vadd.f32 %v98, 1e-08
      %v100 = vrcp.pop %v99
      %v101 = vmul.f32 %v99, %v100
      %v102 = vsub.f32 2.0, %v101
      %v103 = vmul.f32 %v100, %v102
      %v104 = vmul.f32 %v91, %v103
      %105 = vst [vmem:[#allocation8] sm:$0xff] %v104
    $region36: #{tpu_custom_call.1} parent=1 // pred_fallthru
      _
    // Predicated region
    $region37: #{tpu_custom_call.1} parent=1 // pred_check
      _
    $region38: #{tpu_custom_call.1} parent=1 // pred_check_branch
      %107 = sbr.rel (0) target = $region40
    $region39: #{tpu_custom_call.1} parent=1 // pred_region
      %109 = vsyncadd [#allocation5], 0
      %s111 = sshll.u32 [#allocation8], 4
      %s112 = int_to_ptr.vmem [resolvable:$true] %s111
      %s113 = sshll.u32 %s3, 4
      %s114 = int_to_ptr.hbm [resolvable:$true] %s113
      %116 = dma.vmem_to_hbm [thread:$0]  %s112, 128, %s114, [#allocation5]
    $region40: #{tpu_custom_call.1} parent=1 // pred_fallthru
      _
    // Predicated region
    $region41: #{tpu_custom_call.1} parent=1 // pred_check
      _
    $region42: #{tpu_custom_call.1} parent=1 // pred_check_branch
      %118 = sbr.rel (0) target = $region44
    $region43: #{tpu_custom_call.1} parent=1 // pred_region
      %120 = dma.done [#allocation5], 128
    $region44: #{tpu_custom_call.1} parent=1 // pred_fallthru
      _
    %121 = vsyncpa [#allocation4], 1
    %122 = vsyncpa [#allocation7], 1
    %123 = vsyncpa [#allocation5], 1

// kernel: tpu_custom_call.1
$region0: #{tpu_custom_call.1}
  #allocation0 [shape = 'u32[]', space=smem, size = 0x4, offset = 0x4, fixed_abs, tag = 'smem constant byte address 0x4 - core index']
  #allocation1 [shape = 'u32[72,128]{1,0:T(1,128)}', space=vmem, size = 0x9000, scoped, tag = 'internal scratch']
  #allocation2 [shape = 'f32[8,128]{1,0:T(8,128)}', space=vmem, size = 0x1000, scoped, tag = 'scratch operand']
  %s0 = inlined_call_operand.hbm [shape: f32[8,128], index: 0, kind: input, shape index: {}]
  %s1 = inlined_call_operand.hbm [shape: f32[16,128], index: 1, kind: input, shape index: {}]
  %s2 = inlined_call_operand.vmem [shape: f32[1,128], index: 2, kind: input, shape index: {}]
  %s3 = inlined_call_operand.hbm [shape: f32[8,128], index: 3, kind: output, shape index: {}]
  %s4 = sld [smem:[#allocation0]]
  $region45: #{tpu_custom_call.1} parent=0
    _
  %s6 = ssub.s32 1, %s4
  %s7 = scalar_select 0, %s6, %s4
  $region1: #{tpu_custom_call.1} parent=0
    #allocation3 [shape = 'u8[4096]{0}', space=vmem, size = 0x1000, scoped, tag = 'input window, operand 0, single buffered']
    #allocation4 [shape = 's32[1]{0}', space=sflag, size = 0x4, scoped, tag = 'scoped memory for tpu_custom_call.1']
    #allocation5 [shape = 's32[1]{0}', space=sflag, size = 0x4, scoped, tag = 'scoped memory for tpu_custom_call.1']
    #allocation6 [shape = 'u8[8192]{0}', space=vmem, size = 0x2000, scoped, tag = 'input window, operand 1, single buffered']
    #allocation7 [shape = 's32[1]{0}', space=sflag, size = 0x4, scoped, tag = 'scoped memory for tpu_custom_call.1']
    #allocation8 [shape = 'u8[4096]{0}', space=vmem, size = 0x1000, scoped, tag = 'output window, operand 0, single buffered']
    %8 = vsyncpa [#allocation4], 0
    %9 = vsyncpa [#allocation7], 0
    %10 = vsyncpa [#allocation5], 0
    // Predicated region
    $region2: #{tpu_custom_call.1} parent=1 // pred_check
      _
    $region3: #{tpu_custom_call.1} parent=1 // pred_check_branch
      %12 = sbr.rel (0) target = $region5
    $region4: #{tpu_custom_call.1} parent=1 // pred_region
      %14 = vsyncadd [#allocation4], 0
      %s16 = sshll.u32 %s0, 4
      %s17 = int_to_ptr.hbm [resolvable:$true] %s16
      %s18 = sshll.u32 [#allocation3], 4
      %s19 = int_to_ptr.vmem [resolvable:$true] %s18
      %21 = dma.hbm_to_vmem [thread:$0]  %s17, 128, %s19, [#allocation4]
    $region5: #{tpu_custom_call.1} parent=1 // pred_fallthru
      _
    // Predicated region
    $region6: #{tpu_custom_call.1} parent=1 // pred_check
      _
    $region7: #{tpu_custom_call.1} parent=1 // pred_check_branch
      %23 = sbr.rel (0) target = $region9
    $region8: #{tpu_custom_call.1} parent=1 // pred_region
      %25 = vsyncadd [#allocation7], 0
      %s26 = sshll.u32 %s1, 4
      %s27 = int_to_ptr.hbm [resolvable:$true] %s26
      %s28 = sshll.u32 [#allocation6], 4
      %s29 = int_to_ptr.vmem [resolvable:$true] %s28
      %34 = dma.hbm_to_vmem [thread:$0]  %s27, 256, %s29, [#allocation7], 128, 128, 8
    $region9: #{tpu_custom_call.1} parent=1 // pred_fallthru
      _
    // Predicated region
    $region10: #{tpu_custom_call.1} parent=1 // pred_check
      _
    $region11: #{tpu_custom_call.1} parent=1 // pred_check_branch
      %36 = sbr.rel (0) target = $region13
    $region12: #{tpu_custom_call.1} parent=1 // pred_region
      _
    $region13: #{tpu_custom_call.1} parent=1 // pred_fallthru
      _
    // Predicated region
    $region14: #{tpu_custom_call.1} parent=1 // pred_check
      _
    $region15: #{tpu_custom_call.1} parent=1 // pred_check_branch
      %38 = sbr.rel (0) target = $region17
    $region16: #{tpu_custom_call.1} parent=1 // pred_region
      %40 = dma.done [#allocation4], 128
    $region17: #{tpu_custom_call.1} parent=1 // pred_fallthru
      _
    // Predicated region
    $region18: #{tpu_custom_call.1} parent=1 // pred_check
      _
    $region19: #{tpu_custom_call.1} parent=1 // pred_check_branch
      %42 = sbr.rel (0) target = $region21
    $region20: #{tpu_custom_call.1} parent=1 // pred_region
      %44 = dma.done [#allocation7], 256
    $region21: #{tpu_custom_call.1} parent=1 // pred_fallthru
      _
    %v45 = vld [vmem:[#allocation3] sm:$0xff]
    loop: start=0, step=1, limit=2
    $region22: #{tpu_custom_call.1} parent=1 // loop_pre_header
      _
    $region23: #{tpu_custom_call.1} parent=1 // loop_header
      %s47 = sphi 0, %s51
      %p48 = scmp.ge.s32.totalorder %s47, 2
      %v52 = vphi 0.0, %v79
    $region24: #{tpu_custom_call.1} parent=1 // loop_header_branch
      %50 = sbr.rel (%p48) target = $region28
    $region25: #{tpu_custom_call.1} parent=1 // loop_body
      %s53 = smul.u32 %s47, 8
      %s54 = scalar_lea.vmem [#allocation6], %s53
      %v55 = vld [vmem:[%s54] sm:$0xff]
      %v56 = vperm.slane %v55, 0
      %v57 = vmin.f32 %v45, %v56
      %v58 = vadd.f32 %v52, %v57
      %v59 = vperm.slane %v55, 1
      %v60 = vmin.f32 %v45, %v59
      %v61 = vadd.f32 %v58, %v60
      %v62 = vperm.slane %v55, 2
      %v63 = vmin.f32 %v45, %v62
      %v64 = vadd.f32 %v61, %v63
      %v65 = vperm.slane %v55, 3
      %v66 = vmin.f32 %v45, %v65
      %v67 = vadd.f32 %v64, %v66
      %v68 = vperm.slane %v55, 4
      %v69 = vmin.f32 %v45, %v68
      %v70 = vadd.f32 %v67, %v69
      %v71 = vperm.slane %v55, 5
      %v72 = vmin.f32 %v45, %v71
      %v73 = vadd.f32 %v70, %v72
      %v74 = vperm.slane %v55, 6
      %v75 = vmin.f32 %v45, %v74
      %v76 = vadd.f32 %v73, %v75
      %v77 = vperm.slane %v55, 7
      %v78 = vmin.f32 %v45, %v77
      %v79 = vadd.f32 %v76, %v78
    $region26: #{tpu_custom_call.1} parent=1 // loop_footer
      %s51 = sadd.s32 1, %s47
    $region27: #{tpu_custom_call.1} parent=1 // loop_footer_branch
      %46 = sbr.rel target = $region23
    $region28: #{tpu_custom_call.1} parent=1 // loop_exit
      _
    %p80 = scmp.eq.s32.totalorder 0, 0
    // Predicated region
    $region29: #{tpu_custom_call.1} parent=1 // pred_check
      %p81 = pneg %p80
    $region30: #{tpu_custom_call.1} parent=1 // pred_check_branch
      %83 = sbr.rel (%p81) target = $region32
    $region31: #{tpu_custom_call.1} parent=1 // pred_region
      %84 = vst [vmem:[#allocation2] sm:$0xff] 0.0
    $region32: #{tpu_custom_call.1} parent=1 // pred_fallthru
      _
    %v85 = vld [vmem:[#allocation2] sm:$0xff]
    %v86 = vadd.f32 %v85, %v52
    %87 = vst [vmem:[#allocation2] sm:$0xff] %v86
    // Predicated region
    $region33: #{tpu_custom_call.1} parent=1 // pred_check
      %p88 = pneg %p80
    $region34: #{tpu_custom_call.1} parent=1 // pred_check_branch
      %90 = sbr.rel (%p88) target = $region36
    $region35: #{tpu_custom_call.1} parent=1 // pred_region
      %v91 = vld [vmem:[#allocation2] sm:$0xff]
      %v92 = vmul.f32 %v45, 16.0
      %v93 = vld [vmem:[%s2] sm:$0x1]
      %v95 = vperm.slane %v93, 0
      %v97 = vadd.f32 %v92, %v95
      %v98 = vsub.f32 %v97, %v91
      %v99 = vadd.f32 %v98, 1e-08
      %v100 = vrcp.pop %v99
      %v101 = vmul.f32 %v99, %v100
      %v102 = vsub.f32 2.0, %v101
      %v103 = vmul.f32 %v100, %v102
      %v104 = vmul.f32 %v91, %v103
      %105 = vst [vmem:[#allocation8] sm:$0xff] %v104
    $region36: #{tpu_custom_call.1} parent=1 // pred_fallthru
      _
    // Predicated region
    $region37: #{tpu_custom_call.1} parent=1 // pred_check
      _
    $region38: #{tpu_custom_call.1} parent=1 // pred_check_branch
      %107 = sbr.rel (0) target = $region40
    $region39: #{tpu_custom_call.1} parent=1 // pred_region
      %109 = vsyncadd [#allocation5], 0
      %s111 = sshll.u32 [#allocation8], 4
      %s112 = int_to_ptr.vmem [resolvable:$true] %s111
      %s113 = sshll.u32 %s3, 4
      %s114 = int_to_ptr.hbm [resolvable:$true] %s113
      %116 = dma.vmem_to_hbm [thread:$0]  %s112, 128, %s114, [#allocation5]
    $region40: #{tpu_custom_call.1} parent=1 // pred_fallthru
      _
    // Predicated region
    $region41: #{tpu_custom_call.1} parent=1 // pred_check
      _
    $region42: #{tpu_custom_call.1} parent=1 // pred_check_branch
      %118 = sbr.rel (0) target = $region44
    $region43: #{tpu_custom_call.1} parent=1 // pred_region
      %120 = dma.done [#allocation5], 128
    $region44: #{tpu_custom_call.1} parent=1 // pred_fallthru
      _
    %121 = vsyncpa [#allocation4], 1
    %122 = vsyncpa [#allocation7], 1
    %123 = vsyncpa [#allocation5], 1

</llo_original>
